<compile_context>
chip_gen: v7x
topology: tpu7x:2x2x1
jax: 0.10.0
libtpu: 0.0.40
codegen_flags: <defaults>
</compile_context>

<pallas_src>
import functools

import jax
import jax.numpy as jnp
from jax import lax
from jax.experimental import pallas as pl
from jax.experimental.pallas import tpu as pltpu

_LANE = 128


def _round_up(v, m):
    return (v + m - 1) // m * m


def _round_down(v, m):
    return v // m * m


def _cmds_kernel(y_ref, x_ref, gxx_ref, gxy_ref, gyy_ref, *, matmul_dtype):
    """Accumulates per-core partial Grams over the inner (sample-tile) grid axis."""
    j = pl.program_id(1)  # sample-tile (reduction) step within this core's slice

    @pl.when(j == 0)
    def _init():
        gxx_ref[...] = jnp.zeros_like(gxx_ref)
        gxy_ref[...] = jnp.zeros_like(gxy_ref)
        gyy_ref[...] = jnp.zeros_like(gyy_ref)

    x = x_ref[...].astype(jnp.float32)  # (Dx, TN)
    y = y_ref[...].astype(jnp.float32)  # (Dy, TN)

    # Per-column centering over the fully resident feature axis.  Exact under
    # both sample tiling and zero padding of N (zero columns stay zero).
    # TODO(synk): if a v7x bundle dump shows VALU as the saturated slot, switch
    # to uncentered Grams + rank-1 mean-correction accumulators per tile.
    xc = x - jnp.mean(x, axis=0, keepdims=True)
    yc = y - jnp.mean(y, axis=0, keepdims=True)

    xm = xc.astype(matmul_dtype)  # f32 by default; bf16 is a v5e/v6e MXU lever
    ym = yc.astype(matmul_dtype)

    # Small Grams with the big sample tile as the MXU contraction (K = TN).
    # Contraction is the lane axis of both operands (same structure as the
    # q @ k.T flash-attention matmul).  If pl.lower_as_mlir ever shows a
    # per-step vxpose of a whole (D, TN) operand, restructure this dot.
    nt = (((1,), (1,)), ((), ()))
    gxx_ref[...] += lax.dot_general(xm, xm, nt, preferred_element_type=jnp.float32)
    gxy_ref[...] += lax.dot_general(xm, ym, nt, preferred_element_type=jnp.float32)
    gyy_ref[...] += lax.dot_general(ym, ym, nt, preferred_element_type=jnp.float32)


def cmds_loss(y, x, *, vmem_budget_bytes=40 * 2**20, max_tile_samples=None,
              matmul_dtype=jnp.float32):
    """Pallas implementation of CMDS_Loss.forward(y, x).

    y: (Dy, N) encoded data, x: (Dx, N) original data (N samples shared).

    vmem_budget_bytes: budget for the double-buffered input tiles (+ resident
      Gram blocks).  Default 40 MiB is safe on v7x (64 MiB physical VMEM);
      on v5e/v6e (128 MiB) it may be raised for very large Dx+Dy.
    max_tile_samples: optional cap on the sample-tile width (testing / tuning).
    matmul_dtype: operand dtype for the Gram matmuls (accumulation stays f32).
      jnp.bfloat16 gives ~3-4x MXU throughput on v5e/v6e at ~1e-3 relative
      error in the Gram entries.
    """
    y = jnp.asarray(y)
    x = jnp.asarray(x)
    assert y.ndim == 2 and x.ndim == 2
    dy, n = y.shape
    dx, nx = x.shape
    assert n == nx, "x and y must share the sample (last) dimension"

    # ---- sample-tile sizing: VMEM-budget driven -----------------------------
    fixed = 2 * 4 * (dx * dx + dx * dy + dy * dy)       # resident Gram blocks (f32)
    avail = max(vmem_budget_bytes - fixed, 1 << 20)

    nbuf = 2                                            # pipeline buffers per input
    tn_cap = _round_down(avail // (nbuf * 4 * (dx + dy)), _LANE)
    if tn_cap < 4096:
        # Very large Dx+Dy forces a small tile; deepen buffering so the short
        # per-step DMAs are hidden (costs one extra tn*(dx+dy)*4 B per input).
        nbuf = 3
        tn_cap = _round_down(avail // (nbuf * 4 * (dx + dy)), _LANE)
    tn_cap = max(_LANE, min(tn_cap, 64 * 1024))
    if max_tile_samples is not None:
        tn_cap = max(_LANE, min(tn_cap, _round_down(max_tile_samples, _LANE)))

    steps = -(-n // tn_cap)                             # ceil
    num_par = 2 if steps >= 2 else 1                    # v7x: 2 TCs; no-op on 1-TC chips
    steps = _round_up(steps, num_par)
    tn = _round_up(-(-n // steps), _LANE)               # <= tn_cap, lane aligned
    n_pad = steps * tn
    steps_per_core = steps // num_par

    # Zero-pad N (exact: zero columns stay zero after per-column centering).
    if n_pad != n:
        x = jnp.pad(x, ((0, 0), (0, n_pad - n)))
        y = jnp.pad(y, ((0, 0), (0, n_pad - n)))

    in_kwargs = {}
    if nbuf > 2:
        in_kwargs["pipeline_mode"] = pl.Buffered(nbuf)
    y_spec = pl.BlockSpec((dy, tn), lambda p, j: (0, p * steps_per_core + j), **in_kwargs)
    x_spec = pl.BlockSpec((dx, tn), lambda p, j: (0, p * steps_per_core + j), **in_kwargs)

    out_shapes = (
        jax.ShapeDtypeStruct((num_par, dx, dx), jnp.float32),
        jax.ShapeDtypeStruct((num_par, dx, dy), jnp.float32),
        jax.ShapeDtypeStruct((num_par, dy, dy), jnp.float32),
    )
    out_specs = [
        pl.BlockSpec((None, dx, dx), lambda p, j: (p, 0, 0)),
        pl.BlockSpec((None, dx, dy), lambda p, j: (p, 0, 0)),
        pl.BlockSpec((None, dy, dy), lambda p, j: (p, 0, 0)),
    ]

    # Above the 16/32 MiB default scoped limits, below v7x's 64 MiB physical.
    vmem_limit = int(min(max(48 * 2**20, vmem_budget_bytes + 16 * 2**20), 112 * 2**20))

    flops = 2 * n_pad * (dx * dx + dx * dy + dy * dy) + 4 * n_pad * (dx + dy)
    bytes_accessed = 4 * n_pad * (dx + dy) + 4 * num_par * (dx * dx + dx * dy + dy * dy)

    gxx_p, gxy_p, gyy_p = pl.pallas_call(
        functools.partial(_cmds_kernel, matmul_dtype=matmul_dtype),
        out_shape=out_shapes,
        grid_spec=pltpu.PrefetchScalarGridSpec(
            num_scalar_prefetch=0,
            grid=(num_par, steps_per_core),
            in_specs=[y_spec, x_spec],
            out_specs=out_specs,
        ),
        compiler_params=pltpu.CompilerParams(
            # Leading axis: independent per-core partial Grams (megacore on v7x).
            # Inner axis: sample-tile reduction (accumulators revisited) -> serial.
            dimension_semantics=("parallel", "arbitrary"),
            vmem_limit_bytes=vmem_limit,
        ),
        cost_estimate=pl.CostEstimate(
            flops=int(flops), transcendentals=0, bytes_accessed=int(bytes_accessed)),
    )(y, x)

    # Combine the per-core partial Grams (linear in the sample contributions),
    # then the tiny D x D norm/scale arithmetic.
    gxx = jnp.sum(gxx_p, axis=0)
    gxy = jnp.sum(gxy_p, axis=0)
    gyy = jnp.sum(gyy_p, axis=0)
    sxx = jnp.sum(gxx * gxx)
    sxy = jnp.sum(gxy * gxy)
    syy = jnp.sum(gyy * gyy)
    loss = (sxx * (1.0 / (dx * dx))
            - sxy * (2.0 / (dx * dy))
            + syy * (1.0 / (dy * dy)))
    # NOTE: when XTX ~= YTY (loss near 0) the three-term expansion can cancel
    # catastrophically in f32 and even dip slightly negative; the exact value
    # is >= 0, so clamp.  Expect absolute error ~ O(eps_f32 * max(term)).
    return jnp.maximum(loss, jnp.float32(0.0))


def _cmds_reference(y, x):
    """Pure-JAX reference mirroring the PyTorch code exactly."""
    def cov_bias(m):                      # m: 2-D, rowvar=True, bias=True
        fact = 1.0 / m.shape[1]
        mc = m - jnp.mean(m, axis=1, keepdims=True)
        return fact * (mc @ mc.T)
    xtx = cov_bias(x.T)
    yty = cov_bias(y.T)
    return jnp.sum((xtx - yty) ** 2)


if __name__ == "__main__":
    key = jax.random.PRNGKey(0)
    kx, ky = jax.random.split(key)

    # 1) Small single-tile case: x (Dx=32 features, N=16 samples); y (Dy=8, N=16).
    x = jax.random.normal(kx, (32, 16), dtype=jnp.float32)
    y = jax.random.normal(ky, (8, 16), dtype=jnp.float32)
    out = jax.block_until_ready(cmds_loss(y, x))
    ref = jax.block_until_ready(_cmds_reference(y, x))
    assert jnp.allclose(out, ref, rtol=1e-4, atol=1e-4), (out, ref)

    # 2) Multi-tile + two-way parallel grid (tile forced small to exercise the
    #    (2, steps) accumulation path), plus the default big-tile path.
    x2 = jax.random.normal(kx, (32, 1024), dtype=jnp.float32)
    y2 = jax.random.normal(ky, (8, 1024), dtype=jnp.float32)
    ref2 = jax.block_until_ready(_cmds_reference(y2, x2))
    out2 = jax.block_until_ready(cmds_loss(y2, x2, max_tile_samples=256))
    assert jnp.allclose(out2, ref2, rtol=1e-4, atol=1e-4), (out2, ref2)
    out2b = jax.block_until_ready(cmds_loss(y2, x2))
    assert jnp.allclose(out2b, ref2, rtol=1e-4, atol=1e-4), (out2b, ref2)

    # 3) Odd (non 8/128-aligned) feature counts and non-aligned N (padding path).
    x3 = jax.random.normal(kx, (33, 777), dtype=jnp.float32)
    y3 = jax.random.normal(ky, (7, 777), dtype=jnp.float32)
    ref3 = jax.block_until_ready(_cmds_reference(y3, x3))
    out3 = jax.block_until_ready(cmds_loss(y3, x3, max_tile_samples=128))
    assert jnp.allclose(out3, ref3, rtol=1e-4, atol=1e-4), (out3, ref3)

    # 4) bf16 matmul-operand path (v5e/v6e throughput lever), loose tolerance.
    out4 = jax.block_until_ready(
        cmds_loss(y2, x2, max_tile_samples=256, matmul_dtype=jnp.bfloat16))
    assert jnp.allclose(out4, ref2, rtol=5e-2, atol=1e-2), (out4, ref2)

    print("KERNEL_OK")
</pallas_src>

<mosaic_0001>
module attributes {stable_mosaic.version = 11 : i64} {
  func.func @_cmds_kernel(%arg0: i32, %arg1: i32, %arg2: memref<8x128xf32, #tpu.memory_space<vmem>>, %arg3: memref<32x128xf32, #tpu.memory_space<vmem>>, %arg4: memref<1x32x32xf32, #tpu.memory_space<vmem>>, %arg5: memref<1x32x8xf32, #tpu.memory_space<vmem>>, %arg6: memref<1x8x8xf32, #tpu.memory_space<vmem>>) attributes {dimension_semantics = [#tpu.dimension_semantics<parallel>, #tpu.dimension_semantics<arbitrary>], iteration_bounds = array<i64: 1, 1>, scalar_prefetch = 0 : i64, scratch_operands = 0 : i64, tpu.core_type = #tpu.core_type<tc>, window_params = [{transform_indices = @transform_0, window_bounds = array<i64: 8, 128>}, {transform_indices = @transform_1, window_bounds = array<i64: 32, 128>}, {transform_indices = @transform_2, window_bounds = array<i64: 1, 32, 32>}, {transform_indices = @transform_3, window_bounds = array<i64: 1, 32, 8>}, {transform_indices = @transform_4, window_bounds = array<i64: 1, 8, 8>}]} {
    %c0_i32 = arith.constant 0 : i32
    %0 = arith.cmpi eq, %arg1, %c0_i32 : i32
    %1 = arith.extui %0 : i1 to i32
    %c0_i32_0 = arith.constant 0 : i32
    %2 = arith.cmpi ne, %1, %c0_i32_0 : i32
    scf.if %2 {
      %cst_28 = arith.constant 0.000000e+00 : f32
      %38 = vector.broadcast %cst_28 : f32 to vector<32x32xf32>
      %c0_29 = arith.constant 0 : index
      %c0_30 = arith.constant 0 : index
      %c0_31 = arith.constant 0 : index
      %39 = vector.load %arg4[%c0_29, %c0_30, %c0_31] : memref<1x32x32xf32, #tpu.memory_space<vmem>>, vector<1x32x32xf32>
      %40 = vector.shape_cast %39 : vector<1x32x32xf32> to vector<32x32xf32>
      %41 = vector.shape_cast %38 : vector<32x32xf32> to vector<1x32x32xf32>
      tpu.vector_store %arg4[%c0_29, %c0_30, %c0_31], %41 {strides = array<i32>} : memref<1x32x32xf32, #tpu.memory_space<vmem>>, vector<1x32x32xf32>,
      %cst_32 = arith.constant 0.000000e+00 : f32
      %42 = vector.broadcast %cst_32 : f32 to vector<32x8xf32>
      %c0_33 = arith.constant 0 : index
      %c0_34 = arith.constant 0 : index
      %c0_35 = arith.constant 0 : index
      %43 = vector.load %arg5[%c0_33, %c0_34, %c0_35] : memref<1x32x8xf32, #tpu.memory_space<vmem>>, vector<1x32x8xf32>
      %44 = vector.shape_cast %43 : vector<1x32x8xf32> to vector<32x8xf32>
      %45 = vector.shape_cast %42 : vector<32x8xf32> to vector<1x32x8xf32>
      tpu.vector_store %arg5[%c0_33, %c0_34, %c0_35], %45 {strides = array<i32>} : memref<1x32x8xf32, #tpu.memory_space<vmem>>, vector<1x32x8xf32>,
      %cst_36 = arith.constant 0.000000e+00 : f32
      %46 = vector.broadcast %cst_36 : f32 to vector<8x8xf32>
      %c0_37 = arith.constant 0 : index
      %c0_38 = arith.constant 0 : index
      %c0_39 = arith.constant 0 : index
      %47 = vector.load %arg6[%c0_37, %c0_38, %c0_39] : memref<1x8x8xf32, #tpu.memory_space<vmem>>, vector<1x8x8xf32>
      %48 = vector.shape_cast %47 : vector<1x8x8xf32> to vector<8x8xf32>
      %49 = vector.shape_cast %46 : vector<8x8xf32> to vector<1x8x8xf32>
      tpu.vector_store %arg6[%c0_37, %c0_38, %c0_39], %49 {strides = array<i32>} : memref<1x8x8xf32, #tpu.memory_space<vmem>>, vector<1x8x8xf32>,
    } else {
    }
    %c0 = arith.constant 0 : index
    %c0_1 = arith.constant 0 : index
    %3 = vector.load %arg3[%c0, %c0_1] : memref<32x128xf32, #tpu.memory_space<vmem>>, vector<32x128xf32>
    %c0_2 = arith.constant 0 : index
    %c0_3 = arith.constant 0 : index
    %4 = vector.load %arg2[%c0_2, %c0_3] : memref<8x128xf32, #tpu.memory_space<vmem>>, vector<8x128xf32>
    %cst = arith.constant dense<0.000000e+00> : vector<128xf32>
    %5 = vector.multi_reduction <add>, %3, %cst [0] : vector<32x128xf32> to vector<128xf32>
    %6 = vector.shape_cast %5 : vector<128xf32> to vector<1x128xf32>
    %cst_4 = arith.constant 3.200000e+01 : f32
    %7 = vector.broadcast %cst_4 : f32 to vector<1x128xf32>
    %8 = arith.divf %6, %7 : vector<1x128xf32>
    %9 = vector.broadcast %8 : vector<1x128xf32> to vector<32x128xf32>
    %10 = arith.subf %3, %9 : vector<32x128xf32>
    %cst_5 = arith.constant dense<0.000000e+00> : vector<128xf32>
    %11 = vector.multi_reduction <add>, %4, %cst_5 [0] : vector<8x128xf32> to vector<128xf32>
    %12 = vector.shape_cast %11 : vector<128xf32> to vector<1x128xf32>
    %cst_6 = arith.constant 8.000000e+00 : f32
    %13 = vector.broadcast %cst_6 : f32 to vector<1x128xf32>
    %14 = arith.divf %12, %13 : vector<1x128xf32>
    %15 = vector.broadcast %14 : vector<1x128xf32> to vector<8x128xf32>
    %16 = arith.subf %4, %15 : vector<8x128xf32>
    %c0_7 = arith.constant 0 : index
    %c0_8 = arith.constant 0 : index
    %c0_9 = arith.constant 0 : index
    %17 = vector.load %arg4[%c0_7, %c0_8, %c0_9] : memref<1x32x32xf32, #tpu.memory_space<vmem>>, vector<1x32x32xf32>
    %18 = vector.shape_cast %17 : vector<1x32x32xf32> to vector<32x32xf32>
    %cst_10 = arith.constant dense<0.000000e+00> : vector<32x32xf32>
    %19 = tpu.matmul %10, %10, %cst_10 {dimension_numbers = #tpu.dot_dimension_numbers<[1], [1], [0], [0], [0, 0, 1, 0], [], []>} : vector<32x128xf32>, vector<32x128xf32>, vector<32x32xf32> -> vector<32x32xf32>
    %20 = arith.addf %18, %19 : vector<32x32xf32>
    %c0_11 = arith.constant 0 : index
    %c0_12 = arith.constant 0 : index
    %c0_13 = arith.constant 0 : index
    %21 = vector.load %arg4[%c0_11, %c0_12, %c0_13] : memref<1x32x32xf32, #tpu.memory_space<vmem>>, vector<1x32x32xf32>
    %22 = vector.shape_cast %21 : vector<1x32x32xf32> to vector<32x32xf32>
    %23 = vector.shape_cast %20 : vector<32x32xf32> to vector<1x32x32xf32>
    tpu.vector_store %arg4[%c0_11, %c0_12, %c0_13], %23 {strides = array<i32>} : memref<1x32x32xf32, #tpu.memory_space<vmem>>, vector<1x32x32xf32>,
    %c0_14 = arith.constant 0 : index
    %c0_15 = arith.constant 0 : index
    %c0_16 = arith.constant 0 : index
    %24 = vector.load %arg5[%c0_14, %c0_15, %c0_16] : memref<1x32x8xf32, #tpu.memory_space<vmem>>, vector<1x32x8xf32>
    %25 = vector.shape_cast %24 : vector<1x32x8xf32> to vector<32x8xf32>
    %cst_17 = arith.constant dense<0.000000e+00> : vector<32x8xf32>
    %26 = tpu.matmul %10, %16, %cst_17 {dimension_numbers = #tpu.dot_dimension_numbers<[1], [1], [0], [0], [0, 0, 1, 0], [], []>} : vector<32x128xf32>, vector<8x128xf32>, vector<32x8xf32> -> vector<32x8xf32>
    %27 = arith.addf %25, %26 : vector<32x8xf32>
    %c0_18 = arith.constant 0 : index
    %c0_19 = arith.constant 0 : index
    %c0_20 = arith.constant 0 : index
    %28 = vector.load %arg5[%c0_18, %c0_19, %c0_20] : memref<1x32x8xf32, #tpu.memory_space<vmem>>, vector<1x32x8xf32>
    %29 = vector.shape_cast %28 : vector<1x32x8xf32> to vector<32x8xf32>
    %30 = vector.shape_cast %27 : vector<32x8xf32> to vector<1x32x8xf32>
    tpu.vector_store %arg5[%c0_18, %c0_19, %c0_20], %30 {strides = array<i32>} : memref<1x32x8xf32, #tpu.memory_space<vmem>>, vector<1x32x8xf32>,
    %c0_21 = arith.constant 0 : index
    %c0_22 = arith.constant 0 : index
    %c0_23 = arith.constant 0 : index
    %31 = vector.load %arg6[%c0_21, %c0_22, %c0_23] : memref<1x8x8xf32, #tpu.memory_space<vmem>>, vector<1x8x8xf32>
    %32 = vector.shape_cast %31 : vector<1x8x8xf32> to vector<8x8xf32>
    %cst_24 = arith.constant dense<0.000000e+00> : vector<8x8xf32>
    %33 = tpu.matmul %16, %16, %cst_24 {dimension_numbers = #tpu.dot_dimension_numbers<[1], [1], [0], [0], [0, 0, 1, 0], [], []>} : vector<8x128xf32>, vector<8x128xf32>, vector<8x8xf32> -> vector<8x8xf32>
    %34 = arith.addf %32, %33 : vector<8x8xf32>
    %c0_25 = arith.constant 0 : index
    %c0_26 = arith.constant 0 : index
    %c0_27 = arith.constant 0 : index
    %35 = vector.load %arg6[%c0_25, %c0_26, %c0_27] : memref<1x8x8xf32, #tpu.memory_space<vmem>>, vector<1x8x8xf32>
    %36 = vector.shape_cast %35 : vector<1x8x8xf32> to vector<8x8xf32>
    %37 = vector.shape_cast %34 : vector<8x8xf32> to vector<1x8x8xf32>
    tpu.vector_store %arg6[%c0_25, %c0_26, %c0_27], %37 {strides = array<i32>} : memref<1x8x8xf32, #tpu.memory_space<vmem>>, vector<1x8x8xf32>,
    return
  }
  func.func @transform_0(%arg0: i32, %arg1: i32) -> (i32, i32) {
    %c1_i32 = arith.constant 1 : i32
    %0 = arith.muli %arg0, %c1_i32 : i32
    %1 = arith.addi %0, %arg1 : i32
    %c0_i32 = arith.constant 0 : i32
    %c0_i32_0 = arith.constant 0 : i32
    return %c0_i32, %1 : i32, i32
  }
  func.func @transform_1(%arg0: i32, %arg1: i32) -> (i32, i32) {
    %c1_i32 = arith.constant 1 : i32
    %0 = arith.muli %arg0, %c1_i32 : i32
    %1 = arith.addi %0, %arg1 : i32
    %c0_i32 = arith.constant 0 : i32
    %c0_i32_0 = arith.constant 0 : i32
    return %c0_i32, %1 : i32, i32
  }
  func.func @transform_2(%arg0: i32, %arg1: i32) -> (i32, i32, i32) {
    %c0_i32 = arith.constant 0 : i32
    %c0_i32_0 = arith.constant 0 : i32
    %c0_i32_1 = arith.constant 0 : i32
    return %arg0, %c0_i32, %c0_i32_0 : i32, i32, i32
  }
  func.func @transform_3(%arg0: i32, %arg1: i32) -> (i32, i32, i32) {
    %c0_i32 = arith.constant 0 : i32
    %c0_i32_0 = arith.constant 0 : i32
    %c0_i32_1 = arith.constant 0 : i32
    return %arg0, %c0_i32, %c0_i32_0 : i32, i32, i32
  }
  func.func @transform_4(%arg0: i32, %arg1: i32) -> (i32, i32, i32) {
    %c0_i32 = arith.constant 0 : i32
    %c0_i32_0 = arith.constant 0 : i32
    %c0_i32_1 = arith.constant 0 : i32
    return %arg0, %c0_i32, %c0_i32_0 : i32, i32, i32
  }
}

</mosaic_0001>

<llo_original>
// kernel: tpu_custom_call.1
$region0: #{tpu_custom_call.1}
  #allocation0 [shape = 'u32[]', space=smem, size = 0x4, offset = 0x4, fixed_abs, tag = 'smem constant byte address 0x4 - core index']
  #allocation1 [shape = 'u32[144,128]{1,0:T(1,128)}', space=vmem, size = 0x12000, scoped, tag = 'internal scratch']
  %s0 = inlined_call_operand.hbm [shape: f32[8,128], index: 0, kind: input, shape index: {}]
  %s1 = inlined_call_operand.hbm [shape: f32[32,128], index: 1, kind: input, shape index: {}]
  %s2 = inlined_call_operand.hbm [shape: f32[1,32,32], index: 2, kind: output, shape index: {0}]
  %s3 = inlined_call_operand.vmem [shape: f32[1,32,8], index: 3, kind: output, shape index: {1}]
  %s4 = inlined_call_operand.hbm [shape: f32[1,8,8], index: 4, kind: output, shape index: {2}]
  %5 = xla_tuple %s2, %s3, %s4
  %s6 = sld [smem:[#allocation0]]
  $region46: #{tpu_custom_call.1} parent=0
    _
  %s8 = ssub.s32 1, %s6
  %s9 = scalar_select 0, %s8, %s6
  $region1: #{tpu_custom_call.1} parent=0
    #allocation2 [shape = 'u8[4096]{0}', space=vmem, size = 0x1000, scoped, tag = 'input window, operand 0, single buffered']
    #allocation3 [shape = 's32[1]{0}', space=sflag, size = 0x4, scoped, tag = 'scoped memory for tpu_custom_call.1']
    #allocation4 [shape = 's32[1]{0}', space=sflag, size = 0x4, scoped, tag = 'scoped memory for tpu_custom_call.1']
    #allocation5 [shape = 'u8[16384]{0}', space=vmem, size = 0x4000, scoped, tag = 'input window, operand 1, single buffered']
    #allocation6 [shape = 's32[1]{0}', space=sflag, size = 0x4, scoped, tag = 'scoped memory for tpu_custom_call.1']
    #allocation7 [shape = 'u8[16384]{0}', space=vmem, size = 0x4000, scoped, tag = 'output window, operand 0, single buffered']
    #allocation8 [shape = 'u8[4096]{0}', space=vmem, size = 0x1000, scoped, tag = 'output window, operand 2, single buffered']
    #allocation9 [shape = 's32[1]{0}', space=sflag, size = 0x4, scoped, tag = 'scoped memory for tpu_custom_call.1']
    %10 = vsyncpa [#allocation3], 0
    %11 = vsyncpa [#allocation6], 0
    %12 = vsyncpa [#allocation4], 0
    %13 = vsyncpa [#allocation9], 0
    // Predicated region
    $region2: #{tpu_custom_call.1} parent=1 // pred_check
      _
    $region3: #{tpu_custom_call.1} parent=1 // pred_check_branch
      %15 = sbr.rel (0) target = $region5
    $region4: #{tpu_custom_call.1} parent=1 // pred_region
      %s16 = sadd.s32 0, 0
      %s18 = ssub.s32 128, 128
      %19 = vsyncadd [#allocation3], %s18
      %s20 = smul.addr %s16, 128
      %s21 = scalar_lea.hbm %s0, %s20
      %s23 = sshll.u32 [#allocation2], 4
      %s24 = int_to_ptr.vmem [resolvable:$true] %s23
      %26 = dma.hbm_to_vmem [thread:$0]  %s21, 128, %s24, [#allocation3]
    $region5: #{tpu_custom_call.1} parent=1 // pred_fallthru
      _
    // Predicated region
    $region6: #{tpu_custom_call.1} parent=1 // pred_check
      _
    $region7: #{tpu_custom_call.1} parent=1 // pred_check_branch
      %28 = sbr.rel (0) target = $region9
    $region8: #{tpu_custom_call.1} parent=1 // pred_region
      %s29 = sadd.s32 0, 0
      %s31 = ssub.s32 512, 512
      %32 = vsyncadd [#allocation6], %s31
      %s33 = smul.addr %s29, 128
      %s34 = scalar_lea.hbm %s1, %s33
      %s35 = sshll.u32 [#allocation5], 4
      %s36 = int_to_ptr.vmem [resolvable:$true] %s35
      %41 = dma.hbm_to_vmem [thread:$0]  %s34, 512, %s36, [#allocation6], 128, 128, 8
    $region9: #{tpu_custom_call.1} parent=1 // pred_fallthru
      _
    // Predicated region
    $region10: #{tpu_custom_call.1} parent=1 // pred_check
      _
    $region11: #{tpu_custom_call.1} parent=1 // pred_check_branch
      %43 = sbr.rel (0) target = $region13
    $region12: #{tpu_custom_call.1} parent=1 // pred_region
      %44 = dma.done [#allocation3], 128
    $region13: #{tpu_custom_call.1} parent=1 // pred_fallthru
      _
    // Predicated region
    $region14: #{tpu_custom_call.1} parent=1 // pred_check
      _
    $region15: #{tpu_custom_call.1} parent=1 // pred_check_branch
      %46 = sbr.rel (0) target = $region17
    $region16: #{tpu_custom_call.1} parent=1 // pred_region
      %47 = dma.done [#allocation6], 512
    $region17: #{tpu_custom_call.1} parent=1 // pred_fallthru
      _
    %s48 = sadd.s32 0, 0
    %s49 = sadd.s32 0, 0
    %p50 = scmp.eq.s32.totalorder 0, 0
    // Predicated region
    $region18: #{tpu_custom_call.1} parent=1 // pred_check
      %p51 = pneg %p50
    $region19: #{tpu_custom_call.1} parent=1 // pred_check_branch
      %53 = sbr.rel (%p51) target = $region21
    $region20: #{tpu_custom_call.1} parent=1 // pred_region
      %vm54 = vcmask 261120
      %55 = vst.msk [vmem:[#allocation7] sm:$0xff] %vm54, 0.0
      %56 = vst.msk [vmem:[#allocation7 + $0x8] sm:$0xff] %vm54, 0.0
      %57 = vst.msk [vmem:[#allocation7 + $0x10] sm:$0xff] %vm54, 0.0
      %58 = vst.msk [vmem:[#allocation7 + $0x18] sm:$0xff] %vm54, 0.0
      %vm59 = vcmask 64512
      %60 = vst.msk [vmem:[%s3] sm:$0xff] %vm59, 0.0
      %61 = vst.msk [vmem:[%s3 + $0x8] sm:$0xff] %vm59, 0.0
      %62 = vst.msk [vmem:[%s3 + $0x10] sm:$0xff] %vm59, 0.0
      %63 = vst.msk [vmem:[%s3 + $0x18] sm:$0xff] %vm59, 0.0
      %64 = vst.msk [vmem:[#allocation8] sm:$0xff] %vm59, 0.0
    $region21: #{tpu_custom_call.1} parent=1 // pred_fallthru
      _
    %v65 = vld [vmem:[#allocation5] sm:$0xff]
    %v66 = vld [vmem:[#allocation5 + $0x8] sm:$0xff]
    %v67 = vld [vmem:[#allocation5 + $0x10] sm:$0xff]
    %v68 = vld [vmem:[#allocation5 + $0x18] sm:$0xff]
    %v69 = vld [vmem:[#allocation2] sm:$0xff]
    %v70 = vadd.f32 %v65, %v66
    %v71 = vadd.f32 %v70, %v67
    %v72 = vadd.f32 %v71, %v68
    %v73 = vrot.slane %v72, 4
    %v74 = vadd.f32 %v72, %v73
    %v75 = vrot.slane %v74, 2
    %v76 = vadd.f32 %v74, %v75
    %v77 = vrot.slane %v76, 1
    %v78 = vadd.f32 %v76, %v77
    %v79 = vrcp.pop 32.0
    %v80 = vmul.f32 %v78, %v79
    %v81 = vsub.f32 %v65, %v80
    %v82 = vsub.f32 %v66, %v80
    %v83 = vsub.f32 %v67, %v80
    %v84 = vsub.f32 %v68, %v80
    %v85 = vrot.slane %v69, 4
    %v86 = vadd.f32 %v69, %v85
    %v87 = vrot.slane %v86, 2
    %v88 = vadd.f32 %v86, %v87
    %v89 = vrot.slane %v88, 1
    %v90 = vadd.f32 %v88, %v89
    %v91 = vrcp.pop 8.0
    %v92 = vmul.f32 %v90, %v91
    %v93 = vsub.f32 %v69, %v92
    %v94 = vld [vmem:[#allocation7] sm:$0xff]
    %v95 = vld [vmem:[#allocation7 + $0x8] sm:$0xff]
    %v96 = vld [vmem:[#allocation7 + $0x10] sm:$0xff]
    %v97 = vld [vmem:[#allocation7 + $0x18] sm:$0xff]
    %98 = vmatprep.subr.mxu0 0.0
    %99 = vmatpush1.xpose.msra.mxu0 %v81
    %100 = vmatprep.subr.mxu0 0.0
    %101 = vmatpush1.xpose.msra.mxu0 %v82
    %102 = vmatprep.subr.mxu0 0.0
    %103 = vmatpush1.xpose.msra.mxu0 %v83
    %104 = vmatprep.subr.mxu0 0.0
    %105 = vmatpush1.xpose.msra.mxu0 %v84
    %106 = vmatprep.subr.mxu0 0.0
    %107 = vmatpush1.xpose.msra.mxu0 0.0
    %108 = vmatprep.subr.mxu0 0.0
    %109 = vmatpush1.xpose.msra.mxu0 0.0
    %110 = vmatprep.subr.mxu0 0.0
    %111 = vmatpush1.xpose.msra.mxu0 0.0
    %112 = vmatprep.subr.mxu0 0.0
    %113 = vmatpush1.xpose.msra.mxu0 0.0
    %114 = vmatprep.subr.mxu0 0.0
    %115 = vmatpush1.xpose.msra.mxu0 0.0
    %116 = vmatprep.subr.mxu0 0.0
    %117 = vmatpush1.xpose.msra.mxu0 0.0
    %118 = vmatprep.subr.mxu0 0.0
    %119 = vmatpush1.xpose.msra.mxu0 0.0
    %120 = vmatprep.subr.mxu0 0.0
    %121 = vmatpush1.xpose.msra.mxu0 0.0
    %122 = vmatprep.subr.mxu0 0.0
    %123 = vmatpush1.xpose.msra.mxu0 0.0
    %124 = vmatprep.subr.mxu0 0.0
    %125 = vmatpush1.xpose.msra.mxu0 0.0
    %126 = vmatprep.subr.mxu0 0.0
    %127 = vmatpush1.xpose.msra.mxu0 0.0
    %128 = vmatprep.subr.mxu0 0.0
    %129 = vmatpush1.xpose.msra.mxu0 0.0
    %130 = vmatprep.subr.mxu0 0.0
    %131 = vmatpush1.xpose.msra.mxu0 0.0
    %132 = vmatprep.subr.mxu0 0.0
    %133 = vmatpush1.xpose.msra.mxu0 0.0
    %134 = vmatprep.subr.mxu0 0.0
    %135 = vmatpush1.xpose.msra.mxu0 0.0
    %136 = vmatprep.subr.mxu0 0.0
    %137 = vmatpush1.xpose.msra.mxu0 0.0
    %138 = vmatprep.subr.mxu0 0.0
    %139 = vmatpush1.xpose.msra.mxu0 0.0
    %140 = vmatprep.subr.mxu0 0.0
    %141 = vmatpush1.xpose.msra.mxu0 0.0
    %142 = vmatprep.subr.mxu0 0.0
    %143 = vmatpush1.xpose.msra.mxu0 0.0
    %144 = vmatprep.subr.mxu0 0.0
    %145 = vmatpush1.xpose.msra.mxu0 0.0
    %146 = vmatprep.subr.mxu0 0.0
    %147 = vmatpush1.xpose.msra.mxu0 0.0
    %148 = vmatprep.subr.mxu0 0.0
    %149 = vmatpush1.xpose.msra.mxu0 0.0
    %150 = vmatprep.subr.mxu0 0.0
    %151 = vmatpush1.xpose.msra.mxu0 0.0
    %152 = vmatprep.subr.mxu0 0.0
    %153 = vmatpush1.xpose.msra.mxu0 0.0
    %154 = vmatprep.subr.mxu0 0.0
    %155 = vmatpush1.xpose.msra.mxu0 0.0
    %156 = vmatprep.subr.mxu0 0.0
    %157 = vmatpush1.xpose.msra.mxu0 0.0
    %158 = vmatprep.subr.mxu0 0.0
    %159 = vmatpush1.xpose.msra.mxu0 0.0
    %160 = vmatprep.subr.mxu0 0.0
    %161 = vmatpush1.xpose.msra.mxu0 0.0
    %162 = vmatprep.mubr.f32.mxu0 0.0
    %163 = vmatmul.mubr.f32.gmra.mrb[0].mxu0 %v81
    %v164 = vpop.f32.mrb[0].mxu0
    %v165 = vadd.f32 0.0, %v164
    %v166 = vpop.f32.mrb[0].mxu0
    %167 = vmatprep.mubr.f32.mxu0 0.0
    %168 = vmatmul.mubr.f32.gmra.mrb[0].mxu0 %v82
    %v169 = vpop.f32.mrb[0].mxu0
    %v170 = vadd.f32 0.0, %v169
    %v171 = vpop.f32.mrb[0].mxu0
    %172 = vmatprep.mubr.f32.mxu0 0.0
    %173 = vmatmul.mubr.f32.gmra.mrb[0].mxu0 %v83
    %v174 = vpop.f32.mrb[0].mxu0
    %v175 = vadd.f32 0.0, %v174
    %v176 = vpop.f32.mrb[0].mxu0
    %177 = vmatprep.mubr.f32.mxu0 0.0
    %178 = vmatmul.mubr.f32.gmra.mrb[0].mxu0 %v84
    %v179 = vpop.f32.mrb[0].mxu0
    %v180 = vadd.f32 0.0, %v179
    %v181 = vpop.f32.mrb[0].mxu0
    %182 = vdwg.mxu0
    %v183 = vadd.f32 %v94, %v165
    %v184 = vadd.f32 %v95, %v170
    %v185 = vadd.f32 %v96, %v175
    %v186 = vadd.f32 %v97, %v180
    %vm187 = vcmask 261120
    %188 = vst.msk [vmem:[#allocation7] sm:$0xff] %vm187, %v183
    %189 = vst.msk [vmem:[#allocation7 + $0x8] sm:$0xff] %vm187, %v184
    %190 = vst.msk [vmem:[#allocation7 + $0x10] sm:$0xff] %vm187, %v185
    %191 = vst.msk [vmem:[#allocation7 + $0x18] sm:$0xff] %vm187, %v186
    %v192 = vld [vmem:[%s3] sm:$0xff]
    %v193 = vld [vmem:[%s3 + $0x8] sm:$0xff]
    %v194 = vld [vmem:[%s3 + $0x10] sm:$0xff]
    %v195 = vld [vmem:[%s3 + $0x18] sm:$0xff]
    %196 = vmatprep.subr.mxu0 0.0
    %197 = vmatpush1.xpose.msra.mxu0 %v93
    %198 = vmatprep.subr.mxu0 0.0
    %199 = vmatpush1.xpose.msra.mxu0 0.0
    %200 = vmatprep.subr.mxu0 0.0
    %201 = vmatpush1.xpose.msra.mxu0 0.0
    %202 = vmatprep.subr.mxu0 0.0
    %203 = vmatpush1.xpose.msra.mxu0 0.0
    %204 = vmatprep.subr.mxu0 0.0
    %205 = vmatpush1.xpose.msra.mxu0 0.0
    %206 = vmatprep.subr.mxu0 0.0
    %207 = vmatpush1.xpose.msra.mxu0 0.0
    %208 = vmatprep.subr.mxu0 0.0
    %209 = vmatpush1.xpose.msra.mxu0 0.0
    %210 = vmatprep.subr.mxu0 0.0
    %211 = vmatpush1.xpose.msra.mxu0 0.0
    %212 = vmatprep.subr.mxu0 0.0
    %213 = vmatpush1.xpose.msra.mxu0 0.0
    %214 = vmatprep.subr.mxu0 0.0
    %215 = vmatpush1.xpose.msra.mxu0 0.0
    %216 = vmatprep.subr.mxu0 0.0
    %217 = vmatpush1.xpose.msra.mxu0 0.0
    %218 = vmatprep.subr.mxu0 0.0
    %219 = vmatpush1.xpose.msra.mxu0 0.0
    %220 = vmatprep.subr.mxu0 0.0
    %221 = vmatpush1.xpose.msra.mxu0 0.0
    %222 = vmatprep.subr.mxu0 0.0
    %223 = vmatpush1.xpose.msra.mxu0 0.0
    %224 = vmatprep.subr.mxu0 0.0
    %225 = vmatpush1.xpose.msra.mxu0 0.0
    %226 = vmatprep.subr.mxu0 0.0
    %227 = vmatpush1.xpose.msra.mxu0 0.0
    %228 = vmatprep.subr.mxu0 0.0
    %229 = vmatpush1.xpose.msra.mxu0 0.0
    %230 = vmatprep.subr.mxu0 0.0
    %231 = vmatpush1.xpose.msra.mxu0 0.0
    %232 = vmatprep.subr.mxu0 0.0
    %233 = vmatpush1.xpose.msra.mxu0 0.0
    %234 = vmatprep.subr.mxu0 0.0
    %235 = vmatpush1.xpose.msra.mxu0 0.0
    %236 = vmatprep.subr.mxu0 0.0
    %237 = vmatpush1.xpose.msra.mxu0 0.0
    %238 = vmatprep.subr.mxu0 0.0
    %239 = vmatpush1.xpose.msra.mxu0 0.0
    %240 = vmatprep.subr.mxu0 0.0
    %241 = vmatpush1.xpose.msra.mxu0 0.0
    %242 = vmatprep.subr.mxu0 0.0
    %243 = vmatpush1.xpose.msra.mxu0 0.0
    %244 = vmatprep.subr.mxu0 0.0
    %245 = vmatpush1.xpose.msra.mxu0 0.0
    %246 = vmatprep.subr.mxu0 0.0
    %247 = vmatpush1.xpose.msra.mxu0 0.0
    %248 = vmatprep.subr.mxu0 0.0
    %249 = vmatpush1.xpose.msra.mxu0 0.0
    %250 = vmatprep.subr.mxu0 0.0
    %251 = vmatpush1.xpose.msra.mxu0 0.0
    %252 = vmatprep.subr.mxu0 0.0
    %253 = vmatpush1.xpose.msra.mxu0 0.0
    %254 = vmatprep.subr.mxu0 0.0
    %255 = vmatpush1.xpose.msra.mxu0 0.0
    %256 = vmatprep.subr.mxu0 0.0
    %257 = vmatpush1.xpose.msra.mxu0 0.0
    %258 = vmatprep.subr.mxu0 0.0
    %259 = vmatpush1.xpose.msra.mxu0 0.0
    %260 = vmatprep.mubr.f32.mxu0 0.0
    %261 = vmatmul.mubr.f32.gmra.mrb[0].mxu0 %v81
    %v262 = vpop.f32.mrb[0].mxu0
    %v263 = vadd.f32 0.0, %v262
    %v264 = vpop.f32.mrb[0].mxu0
    %265 = vmatprep.mubr.f32.mxu0 0.0
    %266 = vmatmul.mubr.f32.gmra.mrb[0].mxu0 %v82
    %v267 = vpop.f32.mrb[0].mxu0
    %v268 = vadd.f32 0.0, %v267
    %v269 = vpop.f32.mrb[0].mxu0
    %270 = vmatprep.mubr.f32.mxu0 0.0
    %271 = vmatmul.mubr.f32.gmra.mrb[0].mxu0 %v83
    %v272 = vpop.f32.mrb[0].mxu0
    %v273 = vadd.f32 0.0, %v272
    %v274 = vpop.f32.mrb[0].mxu0
    %275 = vmatprep.mubr.f32.mxu0 0.0
    %276 = vmatmul.mubr.f32.gmra.mrb[0].mxu0 %v84
    %v277 = vpop.f32.mrb[0].mxu0
    %v278 = vadd.f32 0.0, %v277
    %v279 = vpop.f32.mrb[0].mxu0
    %280 = vdwg.mxu0
    %v281 = vadd.f32 %v192, %v263
    %v282 = vadd.f32 %v193, %v268
    %v283 = vadd.f32 %v194, %v273
    %v284 = vadd.f32 %v195, %v278
    %vm285 = vcmask 64512
    %286 = vst.msk [vmem:[%s3] sm:$0xff] %vm285, %v281
    %287 = vst.msk [vmem:[%s3 + $0x8] sm:$0xff] %vm285, %v282
    %288 = vst.msk [vmem:[%s3 + $0x10] sm:$0xff] %vm285, %v283
    %289 = vst.msk [vmem:[%s3 + $0x18] sm:$0xff] %vm285, %v284
    %v290 = vld [vmem:[#allocation8] sm:$0xff]
    %291 = vmatprep.subr.mxu0 0.0
    %292 = vmatpush1.xpose.msra.mxu0 %v93
    %293 = vmatprep.subr.mxu0 0.0
    %294 = vmatpush1.xpose.msra.mxu0 0.0
    %295 = vmatprep.subr.mxu0 0.0
    %296 = vmatpush1.xpose.msra.mxu0 0.0
    %297 = vmatprep.subr.mxu0 0.0
    %298 = vmatpush1.xpose.msra.mxu0 0.0
    %299 = vmatprep.subr.mxu0 0.0
    %300 = vmatpush1.xpose.msra.mxu0 0.0
    %301 = vmatprep.subr.mxu0 0.0
    %302 = vmatpush1.xpose.msra.mxu0 0.0
    %303 = vmatprep.subr.mxu0 0.0
    %304 = vmatpush1.xpose.msra.mxu0 0.0
    %305 = vmatprep.subr.mxu0 0.0
    %306 = vmatpush1.xpose.msra.mxu0 0.0
    %307 = vmatprep.subr.mxu0 0.0
    %308 = vmatpush1.xpose.msra.mxu0 0.0
    %309 = vmatprep.subr.mxu0 0.0
    %310 = vmatpush1.xpose.msra.mxu0 0.0
    %311 = vmatprep.subr.mxu0 0.0
    %312 = vmatpush1.xpose.msra.mxu0 0.0
    %313 = vmatprep.subr.mxu0 0.0
    %314 = vmatpush1.xpose.msra.mxu0 0.0
    %315 = vmatprep.subr.mxu0 0.0
    %316 = vmatpush1.xpose.msra.mxu0 0.0
    %317 = vmatprep.subr.mxu0 0.0
    %318 = vmatpush1.xpose.msra.mxu0 0.0
    %319 = vmatprep.subr.mxu0 0.0
    %320 = vmatpush1.xpose.msra.mxu0 0.0
    %321 = vmatprep.subr.mxu0 0.0
    %322 = vmatpush1.xpose.msra.mxu0 0.0
    %323 = vmatprep.subr.mxu0 0.0
    %324 = vmatpush1.xpose.msra.mxu0 0.0
    %325 = vmatprep.subr.mxu0 0.0
    %326 = vmatpush1.xpose.msra.mxu0 0.0
    %327 = vmatprep.subr.mxu0 0.0
    %328 = vmatpush1.xpose.msra.mxu0 0.0
    %329 = vmatprep.subr.mxu0 0.0
    %330 = vmatpush1.xpose.msra.mxu0 0.0
    %331 = vmatprep.subr.mxu0 0.0
    %332 = vmatpush1.xpose.msra.mxu0 0.0
    %333 = vmatprep.subr.mxu0 0.0
    %334 = vmatpush1.xpose.msra.mxu0 0.0
    %335 = vmatprep.subr.mxu0 0.0
    %336 = vmatpush1.xpose.msra.mxu0 0.0
    %337 = vmatprep.subr.mxu0 0.0
    %338 = vmatpush1.xpose.msra.mxu0 0.0
    %339 = vmatprep.subr.mxu0 0.0
    %340 = vmatpush1.xpose.msra.mxu0 0.0
    %341 = vmatprep.subr.mxu0 0.0
    %342 = vmatpush1.xpose.msra.mxu0 0.0
    %343 = vmatprep.subr.mxu0 0.0
    %344 = vmatpush1.xpose.msra.mxu0 0.0
    %345 = vmatprep.subr.mxu0 0.0
    %346 = vmatpush1.xpose.msra.mxu0 0.0
    %347 = vmatprep.subr.mxu0 0.0
    %348 = vmatpush1.xpose.msra.mxu0 0.0
    %349 = vmatprep.subr.mxu0 0.0
    %350 = vmatpush1.xpose.msra.mxu0 0.0
    %351 = vmatprep.subr.mxu0 0.0
    %352 = vmatpush1.xpose.msra.mxu0 0.0
    %353 = vmatprep.subr.mxu0 0.0
    %354 = vmatpush1.xpose.msra.mxu0 0.0
    %355 = vmatprep.mubr.f32.mxu0 0.0
    %356 = vmatmul.mubr.f32.gmra.mrb[0].mxu0 %v93
    %v357 = vpop.f32.mrb[0].mxu0
    %v358 = vadd.f32 0.0, %v357
    %v359 = vpop.f32.mrb[0].mxu0
    %360 = vdwg.mxu0
    %v361 = vadd.f32 %v290, %v358
    %362 = vst.msk [vmem:[#allocation8] sm:$0xff] %vm285, %v361
    // Predicated region
    $region22: #{tpu_custom_call.1} parent=1 // pred_check
      _
    $region23: #{tpu_custom_call.1} parent=1 // pred_check_branch
      %364 = sbr.rel (0) target = $region25
    $region24: #{tpu_custom_call.1} parent=1 // pred_region
      %s366 = ssub.s32 512, 512
      %367 = vsyncadd [#allocation4], %s366
      %s368 = sshll.u32 [#allocation7], 4
      %s369 = int_to_ptr.vmem [resolvable:$true] %s368
      %374 = dma.vmem_to_hbm [thread:$0]  %s369, 512, %s2, [#allocation4], 128, 128, 8
    $region25: #{tpu_custom_call.1} parent=1 // pred_fallthru
      _
    // Predicated region
    $region26: #{tpu_custom_call.1} parent=1 // pred_check
      _
    $region27: #{tpu_custom_call.1} parent=1 // pred_check_branch
      %376 = sbr.rel (0) target = $region29
    $region28: #{tpu_custom_call.1} parent=1 // pred_region
      _
    $region29: #{tpu_custom_call.1} parent=1 // pred_fallthru
      _
    // Predicated region
    $region30: #{tpu_custom_call.1} parent=1 // pred_check
      _
    $region31: #{tpu_custom_call.1} parent=1 // pred_check_branch
      %378 = sbr.rel (0) target = $region33
    $region32: #{tpu_custom_call.1} parent=1 // pred_region
      %s380 = ssub.s32 128, 128
      %381 = vsyncadd [#allocation9], %s380
      %s383 = sshll.u32 [#allocation8], 4
      %s384 = int_to_ptr.vmem [resolvable:$true] %s383
      %386 = dma.vmem_to_hbm [thread:$0]  %s384, 128, %s4, [#allocation9]
    $region33: #{tpu_custom_call.1} parent=1 // pred_fallthru
      _
    // Predicated region
    $region34: #{tpu_custom_call.1} parent=1 // pred_check
      _
    $region35: #{tpu_custom_call.1} parent=1 // pred_check_branch
      %388 = sbr.rel (0) target = $region37
    $region36: #{tpu_custom_call.1} parent=1 // pred_region
      %389 = dma.done [#allocation4], 512
    $region37: #{tpu_custom_call.1} parent=1 // pred_fallthru
      _
    // Predicated region
    $region38: #{tpu_custom_call.1} parent=1 // pred_check
      _
    $region39: #{tpu_custom_call.1} parent=1 // pred_check_branch
      %391 = sbr.rel (0) target = $region41
    $region40: #{tpu_custom_call.1} parent=1 // pred_region
      _
    $region41: #{tpu_custom_call.1} parent=1 // pred_fallthru
      _
    // Predicated region
    $region42: #{tpu_custom_call.1} parent=1 // pred_check
      _
    $region43: #{tpu_custom_call.1} parent=1 // pred_check_branch
      %393 = sbr.rel (0) target = $region45
    $region44: #{tpu_custom_call.1} parent=1 // pred_region
      %394 = dma.done [#allocation9], 128
    $region45: #{tpu_custom_call.1} parent=1 // pred_fallthru
      _
    %395 = vsyncpa [#allocation3], 1
    %396 = vsyncpa [#allocation6], 1
    %397 = vsyncpa [#allocation4], 1
    %398 = vsyncpa [#allocation9], 1

</llo_original>
